<compile_context>
chip_gen: v5e
topology: v5e:2x2
jax: 0.10.0
libtpu: 0.0.40
codegen_flags: <defaults>
</compile_context>

<pallas_src>
import functools

import jax
import jax.numpy as jnp
from jax.experimental import pallas as pl
from jax.experimental.pallas import tpu as pltpu

LN_EPS = 1e-5
_INV_SQRT2 = 0.7071067811865476


def _round_up(a: int, b: int) -> int:
    return (a + b - 1) // b * b


def _mlp_kernel(x_ref, w1_ref, vecs_ref, w2_ref, b2_ref, o_ref):
    # x_ref:    (tm, d_in)          row tile of the input
    # w1_ref:   (d_in, d_model)     full first weight matrix
    # vecs_ref: (3, d_model)        rows: [b1, gamma, beta]
    # w2_ref:   (d_model, d_pad)    second weight, output dim zero-padded to 128k
    # b2_ref:   (1, d_pad)          second bias, zero-padded
    # o_ref:    (tm, d_pad)         lane-dense output tile

    # ---- Linear 1 on the MXU (native dtype in, f32 accumulate) ----
    h = jnp.dot(x_ref[...], w1_ref[...], preferred_element_type=jnp.float32)
    vecs = vecs_ref[...].astype(jnp.float32)          # (3, d_model)
    h = h + vecs[0:1, :]                              # + b1

    # ---- LayerNorm over d_model (biased variance, matches PyTorch) ----
    mean = jnp.mean(h, axis=-1, keepdims=True)
    centered = h - mean
    var = jnp.mean(centered * centered, axis=-1, keepdims=True)
    hn = centered * jax.lax.rsqrt(var + LN_EPS)
    hn = hn * vecs[1:2, :] + vecs[2:3, :]             # * gamma + beta

    # ---- GELU, exact erf form (nn.GELU(approximate='none')) ----
    a = 0.5 * hn * (1.0 + jax.lax.erf(hn * _INV_SQRT2))

    # ---- Linear 2 (lane-dense padded output columns) ----
    a = a.astype(w2_ref.dtype)                        # bf16 weights -> bf16 MXU feed
    out = jnp.dot(a, w2_ref[...], preferred_element_type=jnp.float32)
    out = out + b2_ref[...].astype(jnp.float32)
    o_ref[...] = out.astype(o_ref.dtype)


@functools.partial(jax.jit, static_argnames=("tm", "single_buffer_weights"))
def mlp_before_cross_attn(x, w1, b1, gamma, beta, w2, b2, *, tm=256,
                          single_buffer_weights=True):
    """x: (B, S, d_in) -> (B, S, d_model)."""
    B, S, d_in = x.shape
    d_model = w1.shape[1]
    N = B * S

    # Row tile: large by default, clamped to the (sublane-rounded) row count
    # so tiny inputs don't waste a huge padded tile; always a multiple of 8.
    tm_eff = _round_up(min(tm, _round_up(N, 8)), 8)
    n_pad = _round_up(N, tm_eff)

    # Lane-dense output feature dim (multiple of 128).
    d_pad = _round_up(d_model, 128)

    # ---- wrapper-side layout plumbing (pure data movement, no compute) ----
    x2 = x.reshape(N, d_in)
    if n_pad != N:
        x2 = jnp.pad(x2, ((0, n_pad - N), (0, 0)))

    vecs = jnp.stack([b1, gamma, beta], axis=0)                 # (3, d_model)
    if d_pad != d_model:
        w2_p = jnp.pad(w2, ((0, 0), (0, d_pad - d_model)))
        b2_p = jnp.pad(b2, ((0, d_pad - d_model),))
    else:
        w2_p, b2_p = w2, b2
    b2_p = b2_p.reshape(1, d_pad)

    grid = (n_pad // tm_eff,)

    # Constant operands: index_map never changes -> single buffer is enough.
    if single_buffer_weights:
        def const_spec(shape):
            return pl.BlockSpec(shape, lambda i: (0, 0),
                                pipeline_mode=pl.Buffered(1))
    else:
        def const_spec(shape):
            return pl.BlockSpec(shape, lambda i: (0, 0))

    in_specs = [
        pl.BlockSpec((tm_eff, d_in), lambda i: (i, 0)),   # x row tile (pipelined)
        const_spec((d_in, d_model)),                      # W1
        const_spec((3, d_model)),                         # [b1, gamma, beta]
        const_spec((d_model, d_pad)),                     # W2 (padded cols)
        const_spec((1, d_pad)),                           # b2 (padded)
    ]
    out_specs = pl.BlockSpec((tm_eff, d_pad), lambda i: (i, 0))

    # Advisory cost estimate for the XLA scheduler.
    itemsize = jnp.dtype(x.dtype).itemsize
    flops = 2 * n_pad * (d_in * d_model + d_model * d_pad)
    bytes_accessed = itemsize * (
        n_pad * d_in                 # x
        + n_pad * d_pad              # out
        + d_in * d_model             # W1
        + 3 * d_model                # b1/gamma/beta
        + d_model * d_pad + d_pad)   # W2, b2
    cost = pl.CostEstimate(flops=flops,
                           transcendentals=n_pad * d_model,
                           bytes_accessed=bytes_accessed)

    # Explicit VMEM budget: double-buffered x/out tiles + resident weights
    # (+ sublane padding), with headroom; capped below v7x's 64 MiB physical.
    w_bufs = 1 if single_buffer_weights else 2
    vmem_needed = itemsize * (
        2 * tm_eff * d_in
        + 2 * tm_eff * d_pad
        + w_bufs * (d_in * d_model + 8 * d_model + d_model * d_pad + 8 * d_pad))
    vmem_limit = int(min(max(4 * vmem_needed, 16 * 1024 * 1024),
                         48 * 1024 * 1024))

    out = pl.pallas_call(
        _mlp_kernel,
        out_shape=jax.ShapeDtypeStruct((n_pad, d_pad), x.dtype),
        grid_spec=pltpu.PrefetchScalarGridSpec(
            num_scalar_prefetch=0,
            grid=grid,
            in_specs=in_specs,
            out_specs=out_specs,
        ),
        compiler_params=pltpu.CompilerParams(
            dimension_semantics=("parallel",),
            vmem_limit_bytes=vmem_limit,
        ),
        cost_estimate=cost,
    )(x2, w1, vecs, w2_p, b2_p)

    return out[:N, :d_model].reshape(B, S, d_model)


def _reference(x, w1, b1, gamma, beta, w2, b2):
    h = jnp.einsum("bsi,io->bso", x, w1) + b1
    mean = jnp.mean(h, axis=-1, keepdims=True)
    var = jnp.mean((h - mean) ** 2, axis=-1, keepdims=True)
    hn = (h - mean) / jnp.sqrt(var + LN_EPS)
    hn = hn * gamma + beta
    a = 0.5 * hn * (1.0 + jax.lax.erf(hn / jnp.sqrt(2.0)))
    return jnp.einsum("bso,oj->bsj", a, w2) + b2


if __name__ == "__main__":
    # Small shapes consistent with the module's forward: x (batch, seq, d_in).
    B, S, d_in, d_model = 2, 8, 32, 64

    key = jax.random.PRNGKey(0)
    kx, k1, k2, k3, k4 = jax.random.split(key, 5)

    x = jax.random.normal(kx, (B, S, d_in), dtype=jnp.float32)

    # Deterministic synthetic parameters (PyTorch-like init scales).
    w1 = jax.random.uniform(k1, (d_in, d_model), jnp.float32,
                            -1.0 / jnp.sqrt(d_in), 1.0 / jnp.sqrt(d_in))
    b1 = jax.random.uniform(k2, (d_model,), jnp.float32,
                            -1.0 / jnp.sqrt(d_in), 1.0 / jnp.sqrt(d_in))
    gamma = jnp.ones((d_model,), jnp.float32)
    beta = jnp.zeros((d_model,), jnp.float32)
    w2 = jax.random.uniform(k3, (d_model, d_model), jnp.float32,
                            -1.0 / jnp.sqrt(d_model), 1.0 / jnp.sqrt(d_model))
    b2 = jax.random.uniform(k4, (d_model,), jnp.float32,
                            -1.0 / jnp.sqrt(d_model), 1.0 / jnp.sqrt(d_model))

    try:
        out = mlp_before_cross_attn(x, w1, b1, gamma, beta, w2, b2)
        out = jax.block_until_ready(out)
    except Exception:
        # Fallback for JAX versions that reject pl.Buffered(1) on a
        # pallas_call BlockSpec; semantics are identical, only the constant
        # operands get default double-buffering.
        out = mlp_before_cross_attn(x, w1, b1, gamma, beta, w2, b2,
                                    single_buffer_weights=False)
        out = jax.block_until_ready(out)

    ref = _reference(x, w1, b1, gamma, beta, w2, b2)
    assert out.shape == (B, S, d_model)
    assert jnp.allclose(out, ref, atol=1e-4, rtol=1e-4), "mismatch vs reference"

    print("KERNEL_OK")
</pallas_src>

<mosaic_0001>
module attributes {stable_mosaic.version = 11 : i64} {
  func.func @_mlp_kernel(%arg0: i32, %arg1: memref<16x32xf32, #tpu.memory_space<vmem>>, %arg2: memref<32x64xf32, #tpu.memory_space<vmem>>, %arg3: memref<3x64xf32, #tpu.memory_space<vmem>>, %arg4: memref<64x128xf32, #tpu.memory_space<vmem>>, %arg5: memref<1x128xf32, #tpu.memory_space<vmem>>, %arg6: memref<16x128xf32, #tpu.memory_space<vmem>>) attributes {dimension_semantics = [#tpu.dimension_semantics<parallel>], iteration_bounds = array<i64: 1>, scalar_prefetch = 0 : i64, scratch_operands = 0 : i64, tpu.core_type = #tpu.core_type<tc>, window_params = [{transform_indices = @transform_0, window_bounds = array<i64: 16, 32>}, {pipeline_mode = #tpu.pipeline_mode<synchronous>, transform_indices = @transform_1, window_bounds = array<i64: 32, 64>}, {pipeline_mode = #tpu.pipeline_mode<synchronous>, transform_indices = @transform_2, window_bounds = array<i64: 3, 64>}, {pipeline_mode = #tpu.pipeline_mode<synchronous>, transform_indices = @transform_3, window_bounds = array<i64: 64, 128>}, {pipeline_mode = #tpu.pipeline_mode<synchronous>, transform_indices = @transform_4, window_bounds = array<i64: 1, 128>}, {transform_indices = @transform_5, window_bounds = array<i64: 16, 128>}]} {
    %c0 = arith.constant 0 : index
    %c0_0 = arith.constant 0 : index
    %0 = vector.load %arg1[%c0, %c0_0] : memref<16x32xf32, #tpu.memory_space<vmem>>, vector<16x32xf32>
    %c0_1 = arith.constant 0 : index
    %c0_2 = arith.constant 0 : index
    %1 = vector.load %arg2[%c0_1, %c0_2] : memref<32x64xf32, #tpu.memory_space<vmem>>, vector<32x64xf32>
    %cst = arith.constant dense<0.000000e+00> : vector<16x64xf32>
    %2 = tpu.matmul %0, %1, %cst {dimension_numbers = #tpu.dot_dimension_numbers<[1], [0], [0], [1], [0, 0, 1, 1], [], []>} : vector<16x32xf32>, vector<32x64xf32>, vector<16x64xf32> -> vector<16x64xf32>
    %c0_3 = arith.constant 0 : index
    %c0_4 = arith.constant 0 : index
    %3 = vector.load %arg3[%c0_3, %c0_4] : memref<3x64xf32, #tpu.memory_space<vmem>>, vector<3x64xf32>
    %4 = vector.extract_strided_slice %3 {offsets = [0, 0], sizes = [1, 64], strides = [1, 1]} : vector<3x64xf32> to vector<1x64xf32>
    %5 = vector.broadcast %4 : vector<1x64xf32> to vector<16x64xf32>
    %6 = arith.addf %2, %5 : vector<16x64xf32>
    %cst_5 = arith.constant dense<0.000000e+00> : vector<16xf32>
    %7 = vector.multi_reduction <add>, %6, %cst_5 [1] : vector<16x64xf32> to vector<16xf32>
    %8 = vector.shape_cast %7 : vector<16xf32> to vector<16x1xf32>
    %cst_6 = arith.constant 6.400000e+01 : f32
    %9 = vector.broadcast %cst_6 : f32 to vector<16x1xf32>
    %10 = arith.divf %8, %9 : vector<16x1xf32>
    %11 = vector.broadcast %10 : vector<16x1xf32> to vector<16x64xf32>
    %12 = arith.subf %6, %11 : vector<16x64xf32>
    %13 = arith.mulf %12, %12 : vector<16x64xf32>
    %cst_7 = arith.constant dense<0.000000e+00> : vector<16xf32>
    %14 = vector.multi_reduction <add>, %13, %cst_7 [1] : vector<16x64xf32> to vector<16xf32>
    %15 = vector.shape_cast %14 : vector<16xf32> to vector<16x1xf32>
    %cst_8 = arith.constant 6.400000e+01 : f32
    %16 = vector.broadcast %cst_8 : f32 to vector<16x1xf32>
    %17 = arith.divf %15, %16 : vector<16x1xf32>
    %cst_9 = arith.constant 9.99999974E-6 : f32
    %18 = vector.broadcast %cst_9 : f32 to vector<16x1xf32>
    %19 = arith.addf %17, %18 : vector<16x1xf32>
    %20 = math.rsqrt %19 : vector<16x1xf32>
    %21 = vector.broadcast %20 : vector<16x1xf32> to vector<16x64xf32>
    %22 = arith.mulf %12, %21 : vector<16x64xf32>
    %23 = vector.extract_strided_slice %3 {offsets = [1, 0], sizes = [1, 64], strides = [1, 1]} : vector<3x64xf32> to vector<1x64xf32>
    %24 = vector.broadcast %23 : vector<1x64xf32> to vector<16x64xf32>
    %25 = arith.mulf %22, %24 : vector<16x64xf32>
    %26 = vector.extract_strided_slice %3 {offsets = [2, 0], sizes = [1, 64], strides = [1, 1]} : vector<3x64xf32> to vector<1x64xf32>
    %27 = vector.broadcast %26 : vector<1x64xf32> to vector<16x64xf32>
    %28 = arith.addf %25, %27 : vector<16x64xf32>
    %cst_10 = arith.constant 5.000000e-01 : f32
    %29 = vector.broadcast %cst_10 : f32 to vector<16x64xf32>
    %30 = arith.mulf %29, %28 : vector<16x64xf32>
    %cst_11 = arith.constant 0.707106769 : f32
    %31 = vector.broadcast %cst_11 : f32 to vector<16x64xf32>
    %32 = arith.mulf %28, %31 : vector<16x64xf32>
    %33 = math.erf %32 : vector<16x64xf32>
    %cst_12 = arith.constant 1.000000e+00 : f32
    %34 = vector.broadcast %cst_12 : f32 to vector<16x64xf32>
    %35 = arith.addf %34, %33 : vector<16x64xf32>
    %36 = arith.mulf %30, %35 : vector<16x64xf32>
    %c0_13 = arith.constant 0 : index
    %c0_14 = arith.constant 0 : index
    %37 = vector.load %arg4[%c0_13, %c0_14] : memref<64x128xf32, #tpu.memory_space<vmem>>, vector<64x128xf32>
    %cst_15 = arith.constant dense<0.000000e+00> : vector<16x128xf32>
    %38 = tpu.matmul %36, %37, %cst_15 {dimension_numbers = #tpu.dot_dimension_numbers<[1], [0], [0], [1], [0, 0, 1, 1], [], []>} : vector<16x64xf32>, vector<64x128xf32>, vector<16x128xf32> -> vector<16x128xf32>
    %c0_16 = arith.constant 0 : index
    %c0_17 = arith.constant 0 : index
    %39 = vector.load %arg5[%c0_16, %c0_17] : memref<1x128xf32, #tpu.memory_space<vmem>>, vector<1x128xf32>
    %40 = vector.broadcast %39 : vector<1x128xf32> to vector<16x128xf32>
    %41 = arith.addf %38, %40 : vector<16x128xf32>
    %c0_18 = arith.constant 0 : index
    %c0_19 = arith.constant 0 : index
    %42 = vector.load %arg6[%c0_18, %c0_19] : memref<16x128xf32, #tpu.memory_space<vmem>>, vector<16x128xf32>
    tpu.vector_store %arg6[%c0_18, %c0_19], %41 {strides = array<i32>} : memref<16x128xf32, #tpu.memory_space<vmem>>, vector<16x128xf32>,
    return
  }
  func.func @transform_0(%arg0: i32) -> (i32, i32) {
    %c0_i32 = arith.constant 0 : i32
    %c0_i32_0 = arith.constant 0 : i32
    return %arg0, %c0_i32 : i32, i32
  }
  func.func @transform_1(%arg0: i32) -> (i32, i32) {
    %c0_i32 = arith.constant 0 : i32
    %c0_i32_0 = arith.constant 0 : i32
    %c0_i32_1 = arith.constant 0 : i32
    return %c0_i32, %c0_i32_0 : i32, i32
  }
  func.func @transform_2(%arg0: i32) -> (i32, i32) {
    %c0_i32 = arith.constant 0 : i32
    %c0_i32_0 = arith.constant 0 : i32
    %c0_i32_1 = arith.constant 0 : i32
    return %c0_i32, %c0_i32_0 : i32, i32
  }
  func.func @transform_3(%arg0: i32) -> (i32, i32) {
    %c0_i32 = arith.constant 0 : i32
    %c0_i32_0 = arith.constant 0 : i32
    %c0_i32_1 = arith.constant 0 : i32
    return %c0_i32, %c0_i32_0 : i32, i32
  }
  func.func @transform_4(%arg0: i32) -> (i32, i32) {
    %c0_i32 = arith.constant 0 : i32
    %c0_i32_0 = arith.constant 0 : i32
    %c0_i32_1 = arith.constant 0 : i32
    return %c0_i32, %c0_i32_0 : i32, i32
  }
  func.func @transform_5(%arg0: i32) -> (i32, i32) {
    %c0_i32 = arith.constant 0 : i32
    %c0_i32_0 = arith.constant 0 : i32
    return %arg0, %c0_i32 : i32, i32
  }
}

module attributes {stable_mosaic.version = 11 : i64} {
  func.func @_mlp_kernel(%arg0: i32, %arg1: memref<16x32xf32, #tpu.memory_space<vmem>>, %arg2: memref<32x64xf32, #tpu.memory_space<vmem>>, %arg3: memref<3x64xf32, #tpu.memory_space<vmem>>, %arg4: memref<64x128xf32, #tpu.memory_space<vmem>>, %arg5: memref<1x128xf32, #tpu.memory_space<vmem>>, %arg6: memref<16x128xf32, #tpu.memory_space<vmem>>) attributes {dimension_semantics = [#tpu.dimension_semantics<parallel>], iteration_bounds = array<i64: 1>, scalar_prefetch = 0 : i64, scratch_operands = 0 : i64, tpu.core_type = #tpu.core_type<tc>, window_params = [{transform_indices = @transform_0, window_bounds = array<i64: 16, 32>}, {pipeline_mode = #tpu.pipeline_mode<synchronous>, transform_indices = @transform_1, window_bounds = array<i64: 32, 64>}, {pipeline_mode = #tpu.pipeline_mode<synchronous>, transform_indices = @transform_2, window_bounds = array<i64: 3, 64>}, {pipeline_mode = #tpu.pipeline_mode<synchronous>, transform_indices = @transform_3, window_bounds = array<i64: 64, 128>}, {pipeline_mode = #tpu.pipeline_mode<synchronous>, transform_indices = @transform_4, window_bounds = array<i64: 1, 128>}, {transform_indices = @transform_5, window_bounds = array<i64: 16, 128>}]} {
    %c0 = arith.constant 0 : index
    %c0_0 = arith.constant 0 : index
    %0 = vector.load %arg1[%c0, %c0_0] : memref<16x32xf32, #tpu.memory_space<vmem>>, vector<16x32xf32>
    %c0_1 = arith.constant 0 : index
    %c0_2 = arith.constant 0 : index
    %1 = vector.load %arg2[%c0_1, %c0_2] : memref<32x64xf32, #tpu.memory_space<vmem>>, vector<32x64xf32>
    %cst = arith.constant dense<0.000000e+00> : vector<16x64xf32>
    %2 = tpu.matmul %0, %1, %cst {dimension_numbers = #tpu.dot_dimension_numbers<[1], [0], [0], [1], [0, 0, 1, 1], [], []>} : vector<16x32xf32>, vector<32x64xf32>, vector<16x64xf32> -> vector<16x64xf32>
    %c0_3 = arith.constant 0 : index
    %c0_4 = arith.constant 0 : index
    %3 = vector.load %arg3[%c0_3, %c0_4] : memref<3x64xf32, #tpu.memory_space<vmem>>, vector<3x64xf32>
    %4 = vector.extract_strided_slice %3 {offsets = [0, 0], sizes = [1, 64], strides = [1, 1]} : vector<3x64xf32> to vector<1x64xf32>
    %5 = vector.broadcast %4 : vector<1x64xf32> to vector<16x64xf32>
    %6 = arith.addf %2, %5 : vector<16x64xf32>
    %cst_5 = arith.constant dense<0.000000e+00> : vector<16xf32>
    %7 = vector.multi_reduction <add>, %6, %cst_5 [1] : vector<16x64xf32> to vector<16xf32>
    %8 = vector.shape_cast %7 : vector<16xf32> to vector<16x1xf32>
    %cst_6 = arith.constant 6.400000e+01 : f32
    %9 = vector.broadcast %cst_6 : f32 to vector<16x1xf32>
    %10 = arith.divf %8, %9 : vector<16x1xf32>
    %11 = vector.broadcast %10 : vector<16x1xf32> to vector<16x64xf32>
    %12 = arith.subf %6, %11 : vector<16x64xf32>
    %13 = arith.mulf %12, %12 : vector<16x64xf32>
    %cst_7 = arith.constant dense<0.000000e+00> : vector<16xf32>
    %14 = vector.multi_reduction <add>, %13, %cst_7 [1] : vector<16x64xf32> to vector<16xf32>
    %15 = vector.shape_cast %14 : vector<16xf32> to vector<16x1xf32>
    %cst_8 = arith.constant 6.400000e+01 : f32
    %16 = vector.broadcast %cst_8 : f32 to vector<16x1xf32>
    %17 = arith.divf %15, %16 : vector<16x1xf32>
    %cst_9 = arith.constant 9.99999974E-6 : f32
    %18 = vector.broadcast %cst_9 : f32 to vector<16x1xf32>
    %19 = arith.addf %17, %18 : vector<16x1xf32>
    %20 = math.rsqrt %19 : vector<16x1xf32>
    %21 = vector.broadcast %20 : vector<16x1xf32> to vector<16x64xf32>
    %22 = arith.mulf %12, %21 : vector<16x64xf32>
    %23 = vector.extract_strided_slice %3 {offsets = [1, 0], sizes = [1, 64], strides = [1, 1]} : vector<3x64xf32> to vector<1x64xf32>
    %24 = vector.broadcast %23 : vector<1x64xf32> to vector<16x64xf32>
    %25 = arith.mulf %22, %24 : vector<16x64xf32>
    %26 = vector.extract_strided_slice %3 {offsets = [2, 0], sizes = [1, 64], strides = [1, 1]} : vector<3x64xf32> to vector<1x64xf32>
    %27 = vector.broadcast %26 : vector<1x64xf32> to vector<16x64xf32>
    %28 = arith.addf %25, %27 : vector<16x64xf32>
    %cst_10 = arith.constant 5.000000e-01 : f32
    %29 = vector.broadcast %cst_10 : f32 to vector<16x64xf32>
    %30 = arith.mulf %29, %28 : vector<16x64xf32>
    %cst_11 = arith.constant 0.707106769 : f32
    %31 = vector.broadcast %cst_11 : f32 to vector<16x64xf32>
    %32 = arith.mulf %28, %31 : vector<16x64xf32>
    %33 = math.erf %32 : vector<16x64xf32>
    %cst_12 = arith.constant 1.000000e+00 : f32
    %34 = vector.broadcast %cst_12 : f32 to vector<16x64xf32>
    %35 = arith.addf %34, %33 : vector<16x64xf32>
    %36 = arith.mulf %30, %35 : vector<16x64xf32>
    %c0_13 = arith.constant 0 : index
    %c0_14 = arith.constant 0 : index
    %37 = vector.load %arg4[%c0_13, %c0_14] : memref<64x128xf32, #tpu.memory_space<vmem>>, vector<64x128xf32>
    %cst_15 = arith.constant dense<0.000000e+00> : vector<16x128xf32>
    %38 = tpu.matmul %36, %37, %cst_15 {dimension_numbers = #tpu.dot_dimension_numbers<[1], [0], [0], [1], [0, 0, 1, 1], [], []>} : vector<16x64xf32>, vector<64x128xf32>, vector<16x128xf32> -> vector<16x128xf32>
    %c0_16 = arith.constant 0 : index
    %c0_17 = arith.constant 0 : index
    %39 = vector.load %arg5[%c0_16, %c0_17] : memref<1x128xf32, #tpu.memory_space<vmem>>, vector<1x128xf32>
    %40 = vector.broadcast %39 : vector<1x128xf32> to vector<16x128xf32>
    %41 = arith.addf %38, %40 : vector<16x128xf32>
    %c0_18 = arith.constant 0 : index
    %c0_19 = arith.constant 0 : index
    %42 = vector.load %arg6[%c0_18, %c0_19] : memref<16x128xf32, #tpu.memory_space<vmem>>, vector<16x128xf32>
    tpu.vector_store %arg6[%c0_18, %c0_19], %41 {strides = array<i32>} : memref<16x128xf32, #tpu.memory_space<vmem>>, vector<16x128xf32>,
    return
  }
  func.func @transform_0(%arg0: i32) -> (i32, i32) {
    %c0_i32 = arith.constant 0 : i32
    %c0_i32_0 = arith.constant 0 : i32
    return %arg0, %c0_i32 : i32, i32
  }
  func.func @transform_1(%arg0: i32) -> (i32, i32) {
    %c0_i32 = arith.constant 0 : i32
    %c0_i32_0 = arith.constant 0 : i32
    %c0_i32_1 = arith.constant 0 : i32
    return %c0_i32, %c0_i32_0 : i32, i32
  }
  func.func @transform_2(%arg0: i32) -> (i32, i32) {
    %c0_i32 = arith.constant 0 : i32
    %c0_i32_0 = arith.constant 0 : i32
    %c0_i32_1 = arith.constant 0 : i32
    return %c0_i32, %c0_i32_0 : i32, i32
  }
  func.func @transform_3(%arg0: i32) -> (i32, i32) {
    %c0_i32 = arith.constant 0 : i32
    %c0_i32_0 = arith.constant 0 : i32
    %c0_i32_1 = arith.constant 0 : i32
    return %c0_i32, %c0_i32_0 : i32, i32
  }
  func.func @transform_4(%arg0: i32) -> (i32, i32) {
    %c0_i32 = arith.constant 0 : i32
    %c0_i32_0 = arith.constant 0 : i32
    %c0_i32_1 = arith.constant 0 : i32
    return %c0_i32, %c0_i32_0 : i32, i32
  }
  func.func @transform_5(%arg0: i32) -> (i32, i32) {
    %c0_i32 = arith.constant 0 : i32
    %c0_i32_0 = arith.constant 0 : i32
    return %arg0, %c0_i32 : i32, i32
  }
}

</mosaic_0001>

<llo_original>
// kernel: mlp_before_cross_attn.1
$region0: #{mlp_before_cross_attn.1}
  #allocation0 [shape = 'u32[]', space=smem, size = 0x4, offset = 0x4, fixed_abs, tag = 'smem constant byte address 0x4 - core index']
  #allocation1 [shape = 'u32[72,128]{1,0:T(1,128)}', space=vmem, size = 0x9000, scoped, tag = 'internal scratch']
  %s0 = inlined_call_operand.vmem [shape: f32[16,32], index: 0, kind: input, shape index: {}]
  %s1 = inlined_call_operand.vmem [shape: f32[32,64], index: 1, kind: input, shape index: {}]
  %s2 = inlined_call_operand.vmem [shape: f32[3,64], index: 2, kind: input, shape index: {}]
  %s3 = inlined_call_operand.vmem [shape: f32[64,128], index: 3, kind: input, shape index: {}]
  %s4 = inlined_call_operand.vmem [shape: f32[1,128], index: 4, kind: input, shape index: {}]
  %s5 = inlined_call_operand.vmem [shape: f32[16,128], index: 5, kind: output, shape index: {}]
  %s6 = sld [smem:[#allocation0]]
  $region30: #{mlp_before_cross_attn.1} parent=0
    _
  %s8 = ssub.s32 1, %s6
  %s9 = scalar_select 0, %s8, %s6
  // Predicated region
  $region2: #{mlp_before_cross_attn.1} parent=0 // pred_check
    _
  $region3: #{mlp_before_cross_attn.1} parent=0 // pred_check_branch
    %11 = sbr.rel (0) target = $region5
  $region4: #{mlp_before_cross_attn.1} parent=0 // pred_region
    _
  $region5: #{mlp_before_cross_attn.1} parent=0 // pred_fallthru
    _
  // Predicated region
  $region6: #{mlp_before_cross_attn.1} parent=0 // pred_check
    _
  $region7: #{mlp_before_cross_attn.1} parent=0 // pred_check_branch
    %13 = sbr.rel (0) target = $region9
  $region8: #{mlp_before_cross_attn.1} parent=0 // pred_region
    _
  $region9: #{mlp_before_cross_attn.1} parent=0 // pred_fallthru
    _
  // Predicated region
  $region10: #{mlp_before_cross_attn.1} parent=0 // pred_check
    _
  $region11: #{mlp_before_cross_attn.1} parent=0 // pred_check_branch
    %15 = sbr.rel (0) target = $region13
  $region12: #{mlp_before_cross_attn.1} parent=0 // pred_region
    _
  $region13: #{mlp_before_cross_attn.1} parent=0 // pred_fallthru
    _
  // Predicated region
  $region14: #{mlp_before_cross_attn.1} parent=0 // pred_check
    _
  $region15: #{mlp_before_cross_attn.1} parent=0 // pred_check_branch
    %17 = sbr.rel (0) target = $region17
  $region16: #{mlp_before_cross_attn.1} parent=0 // pred_region
    _
  $region17: #{mlp_before_cross_attn.1} parent=0 // pred_fallthru
    _
  // Predicated region
  $region18: #{mlp_before_cross_attn.1} parent=0 // pred_check
    _
  $region19: #{mlp_before_cross_attn.1} parent=0 // pred_check_branch
    %19 = sbr.rel (0) target = $region21
  $region20: #{mlp_before_cross_attn.1} parent=0 // pred_region
    _
  $region21: #{mlp_before_cross_attn.1} parent=0 // pred_fallthru
    _
  %v20 = vld [vmem:[%s0] sm:$0xff]
  %v21 = vld [vmem:[%s0 + $0x8] sm:$0xff]
  %v22 = vld [vmem:[%s1] sm:$0xff]
  %v23 = vld [vmem:[%s1 + $0x8] sm:$0xff]
  %v24 = vld [vmem:[%s1 + $0x10] sm:$0xff]
  %v25 = vld [vmem:[%s1 + $0x18] sm:$0xff]
  %v26 = vld [vmem:[%s2] sm:$0x7]
  %v27 = vperm.slane %v26, 0
  %vm28 = vcmask 261120
  %v30 = vsel %vm28, %v20, 0
  %v33 = vsel %vm28, %v21, 0
  %35 = vmatpush.msra.mxu0 0.0
  %36 = vmatpush.msra.mxu0 0.0
  %37 = vmatpush.msra.mxu0 0.0
  %38 = vmatpush.msra.mxu0 0.0
  %39 = vmatpush.msra.mxu0 0.0
  %40 = vmatpush.msra.mxu0 0.0
  %41 = vmatpush.msra.mxu0 0.0
  %42 = vmatpush.msra.mxu0 0.0
  %43 = vmatpush.msra.mxu0 0.0
  %44 = vmatpush.msra.mxu0 0.0
  %45 = vmatpush.msra.mxu0 0.0
  %46 = vmatpush.msra.mxu0 0.0
  %47 = vmatpush.msra.mxu0 %v25
  %48 = vmatpush.msra.mxu0 %v24
  %49 = vmatpush.msra.mxu0 %v23
  %50 = vmatpush.msra.mxu0 %v22
  %51 = vmatmul.f32.gmra.mxu0 %v30
  %v52 = vpop.f32.mrf.mxu0
  %v53 = vadd.f32 %v27, %v52
  %54 = vmatmul.f32.gmra.mxu0 %v33
  %v55 = vpop.f32.mrf.mxu0
  %v56 = vadd.f32 %v27, %v55
  %57 = vdwg.mxu0
  %vm58 = vcmask 523264
  %v59 = vsel %vm58, %v53, 0.0
  %60 = vadd.xlane.f32.xlu0 %v59
  %v61 = vpop.xlane.xlu0 %60
  %v62 = vsel %vm58, %v56, 0.0
  %63 = vadd.xlane.f32.xlu0 %v62
  %v64 = vpop.xlane.xlu0 %63
  %v65 = vrcp.pop 64.0
  %v66 = vmul.f32 64.0, %v65
  %v67 = vsub.f32 1.0, %v66
  %v68 = vmul.f32 %v65, %v67
  %v69 = vadd.f32 %v65, %v68
  %vm70 = vweird.f32 %v65
  %v71 = vsel %vm70, %v65, %v69
  %v72 = vmul.f32 %v61, %v71
  %v73 = vmul.f32 %v64, %v71
  %v74 = vsub.f32 %v53, %v72
  %v75 = vsub.f32 %v56, %v73
  %v76 = vmul.f32 %v74, %v74
  %v77 = vmul.f32 %v75, %v75
  %v78 = vsel %vm58, %v76, 0.0
  %79 = vadd.xlane.f32.xlu0 %v78
  %v80 = vpop.xlane.xlu0 %79
  %v81 = vsel %vm58, %v77, 0.0
  %82 = vadd.xlane.f32.xlu0 %v81
  %v83 = vpop.xlane.xlu0 %82
  %v84 = vmul.f32 %v80, %v71
  %v85 = vmul.f32 %v83, %v71
  %v86 = vadd.f32 %v84, 1e-05
  %v87 = vadd.f32 %v85, 1e-05
  %v88 = vrsqrt.pop %v86
  %v89 = vmul.f32 %v88, %v86
  %v90 = vmul.f32 %v89, %v88
  %v91 = vmul.f32 0.5, %v90
  %v92 = vsub.f32 1.5, %v91
  %v93 = vmul.f32 %v88, %v92
  %vm94 = vweird.f32 %v86
  %vm95 = vweird.f32 %v88
  %vm96 = vmor %vm94, %vm95
  %v97 = vsel %vm96, %v88, %v93
  %v98 = vrsqrt.pop %v87
  %v99 = vmul.f32 %v98, %v87
  %v100 = vmul.f32 %v99, %v98
  %v101 = vmul.f32 0.5, %v100
  %v102 = vsub.f32 1.5, %v101
  %v103 = vmul.f32 %v98, %v102
  %vm104 = vweird.f32 %v87
  %vm105 = vweird.f32 %v98
  %vm106 = vmor %vm104, %vm105
  %v107 = vsel %vm106, %v98, %v103
  %v108 = vmul.f32 %v74, %v97
  %v109 = vmul.f32 %v75, %v107
  %v110 = vperm.slane %v26, 1
  %v111 = vmul.f32 %v108, %v110
  %v112 = vmul.f32 %v109, %v110
  %v113 = vperm.slane %v26, 2
  %v114 = vadd.f32 %v111, %v113
  %v115 = vadd.f32 %v112, %v113
  %v116 = vmul.f32 %v114, 0.5
  %v117 = vmul.f32 %v115, 0.5
  %v118 = vmul.f32 %v114, 0.70710677
  %v119 = vmul.f32 %v115, 0.70710677
  %v120 = vmul.f32 %v118, %v118
  %v121 = vmin.f32 16.0, %v120
  %v122 = vmul.f32 %v121, 2.1237322e-06
  %v123 = vadd.f32 %v122, 0.00028619796
  %v124 = vmul.f32 %v121, %v123
  %v125 = vadd.f32 %v124, 0.0036580483
  %v126 = vmul.f32 %v121, %v125
  %v127 = vadd.f32 %v126, 0.05243302
  %v128 = vmul.f32 %v121, %v127
  %v129 = vadd.f32 %v128, 0.18741608
  %v130 = vmul.f32 %v121, %v129
  %v131 = vadd.f32 %v130, 1.1283791
  %v132 = vmul.f32 %v118, %v131
  %v133 = vmul.f32 %v121, 3.8918573e-05
  %v134 = vadd.f32 %v133, 0.001143296
  %v135 = vmul.f32 %v121, %v134
  %v136 = vadd.f32 %v135, 0.014752088
  %v137 = vmul.f32 %v121, %v136
  %v138 = vadd.f32 %v137, 0.112945676
  %v139 = vmul.f32 %v121, %v138
  %v140 = vadd.f32 %v139, 0.4994258
  %v141 = vmul.f32 %v121, %v140
  %v142 = vadd.f32 %v141, 1.0
  %v143 = vrcp.pop %v142
  %v144 = vmul.f32 %v142, %v143
  %v145 = vsub.f32 1.0, %v144
  %v146 = vmul.f32 %v143, %v145
  %v147 = vadd.f32 %v143, %v146
  %vm148 = vweird.f32 %v142
  %vm149 = vweird.f32 %v143
  %vm150 = vmor %vm148, %vm149
  %v151 = vsel %vm150, %v143, %v147
  %v152 = vand.u32 2147483647, %v142
  %vm153 = vcmp.eq.f32.partialorder %v152, 8.507059e+37
  %v154 = vand.u32 %v142, 2147483648
  %v155 = vor.u32 1.1754944e-38, %v154
  %v156 = vsel %vm153, %v155, %v151
  %v157 = vmul.f32 %v132, %v156
  %v158 = vmin.f32 %v157, 1.0
  %v159 = vmax.f32 %v158, -1.0
  %v160 = vmul.f32 %v119, %v119
  %v161 = vmin.f32 16.0, %v160
  %v162 = vmul.f32 %v161, 2.1237322e-06
  %v163 = vadd.f32 %v162, 0.00028619796
  %v164 = vmul.f32 %v161, %v163
  %v165 = vadd.f32 %v164, 0.0036580483
  %v166 = vmul.f32 %v161, %v165
  %v167 = vadd.f32 %v166, 0.05243302
  %v168 = vmul.f32 %v161, %v167
  %v169 = vadd.f32 %v168, 0.18741608
  %v170 = vmul.f32 %v161, %v169
  %v171 = vadd.f32 %v170, 1.1283791
  %v172 = vmul.f32 %v119, %v171
  %v173 = vmul.f32 %v161, 3.8918573e-05
  %v174 = vadd.f32 %v173, 0.001143296
  %v175 = vmul.f32 %v161, %v174
  %v176 = vadd.f32 %v175, 0.014752088
  %v177 = vmul.f32 %v161, %v176
  %v178 = vadd.f32 %v177, 0.112945676
  %v179 = vmul.f32 %v161, %v178
  %v180 = vadd.f32 %v179, 0.4994258
  %v181 = vmul.f32 %v161, %v180
  %v182 = vadd.f32 %v181, 1.0
  %v183 = vrcp.pop %v182
  %v184 = vmul.f32 %v182, %v183
  %v185 = vsub.f32 1.0, %v184
  %v186 = vmul.f32 %v183, %v185
  %v187 = vadd.f32 %v183, %v186
  %vm188 = vweird.f32 %v182
  %vm189 = vweird.f32 %v183
  %vm190 = vmor %vm188, %vm189
  %v191 = vsel %vm190, %v183, %v187
  %v192 = vand.u32 2147483647, %v182
  %vm193 = vcmp.eq.f32.partialorder %v192, 8.507059e+37
  %v194 = vand.u32 %v182, 2147483648
  %v195 = vor.u32 1.1754944e-38, %v194
  %v196 = vsel %vm193, %v195, %v191
  %v197 = vmul.f32 %v172, %v196
  %v198 = vmin.f32 %v197, 1.0
  %v199 = vmax.f32 %v198, -1.0
  %v200 = vadd.f32 %v159, 1.0
  %v201 = vadd.f32 %v199, 1.0
  %v202 = vmul.f32 %v116, %v200
  %v203 = vmul.f32 %v117, %v201
  %v204 = vld [vmem:[%s3] sm:$0xff]
  %v205 = vld [vmem:[%s3 + $0x8] sm:$0xff]
  %v206 = vld [vmem:[%s3 + $0x10] sm:$0xff]
  %v207 = vld [vmem:[%s3 + $0x18] sm:$0xff]
  %v208 = vld [vmem:[%s3 + $0x20] sm:$0xff]
  %v209 = vld [vmem:[%s3 + $0x28] sm:$0xff]
  %v210 = vld [vmem:[%s3 + $0x30] sm:$0xff]
  %v211 = vld [vmem:[%s3 + $0x38] sm:$0xff]
  %v212 = vld [vmem:[%s4] sm:$0x1]
  %v214 = vperm.slane %v212, 0
  %v217 = vsel %vm58, %v202, 0
  %v220 = vsel %vm58, %v203, 0
  %222 = vmatpush.msra.mxu0 0.0
  %223 = vmatpush.msra.mxu0 0.0
  %224 = vmatpush.msra.mxu0 0.0
  %225 = vmatpush.msra.mxu0 0.0
  %226 = vmatpush.msra.mxu0 0.0
  %227 = vmatpush.msra.mxu0 0.0
  %228 = vmatpush.msra.mxu0 0.0
  %229 = vmatpush.msra.mxu0 0.0
  %230 = vmatpush.msra.mxu0 %v211
  %231 = vmatpush.msra.mxu0 %v210
  %232 = vmatpush.msra.mxu0 %v209
  %233 = vmatpush.msra.mxu0 %v208
  %234 = vmatpush.msra.mxu0 %v207
  %235 = vmatpush.msra.mxu0 %v206
  %236 = vmatpush.msra.mxu0 %v205
  %237 = vmatpush.msra.mxu0 %v204
  %238 = vmatmul.f32.gmra.mxu0 %v217
  %v239 = vpop.f32.mrf.mxu0
  %v240 = vadd.f32 %v214, %v239
  %241 = vmatmul.f32.gmra.mxu0 %v220
  %v242 = vpop.f32.mrf.mxu0
  %v243 = vadd.f32 %v214, %v242
  %244 = vdwg.mxu0
  %245 = vst [vmem:[%s5] sm:$0xff] %v240
  %246 = vst [vmem:[%s5 + $0x8] sm:$0xff] %v243
  // Predicated region
  $region22: #{mlp_before_cross_attn.1} parent=0 // pred_check
    _
  $region23: #{mlp_before_cross_attn.1} parent=0 // pred_check_branch
    %248 = sbr.rel (0) target = $region25
  $region24: #{mlp_before_cross_attn.1} parent=0 // pred_region
    _
  $region25: #{mlp_before_cross_attn.1} parent=0 // pred_fallthru
    _
  // Predicated region
  $region26: #{mlp_before_cross_attn.1} parent=0 // pred_check
    _
  $region27: #{mlp_before_cross_attn.1} parent=0 // pred_check_branch
    %250 = sbr.rel (0) target = $region29
  $region28: #{mlp_before_cross_attn.1} parent=0 // pred_region
    _
  $region29: #{mlp_before_cross_attn.1} parent=0 // pred_fallthru
    _

// kernel: mlp_before_cross_attn.1
$region0: #{mlp_before_cross_attn.1}
  #allocation0 [shape = 'u32[]', space=smem, size = 0x4, offset = 0x4, fixed_abs, tag = 'smem constant byte address 0x4 - core index']
  #allocation1 [shape = 'u32[72,128]{1,0:T(1,128)}', space=vmem, size = 0x9000, scoped, tag = 'internal scratch']
  %s0 = inlined_call_operand.vmem [shape: f32[16,32], index: 0, kind: input, shape index: {}]
  %s1 = inlined_call_operand.vmem [shape: f32[32,64], index: 1, kind: input, shape index: {}]
  %s2 = inlined_call_operand.vmem [shape: f32[3,64], index: 2, kind: input, shape index: {}]
  %s3 = inlined_call_operand.vmem [shape: f32[64,128], index: 3, kind: input, shape index: {}]
  %s4 = inlined_call_operand.vmem [shape: f32[1,128], index: 4, kind: input, shape index: {}]
  %s5 = inlined_call_operand.vmem [shape: f32[16,128], index: 5, kind: output, shape index: {}]
  %s6 = sld [smem:[#allocation0]]
  $region30: #{mlp_before_cross_attn.1} parent=0
    _
  %s8 = ssub.s32 1, %s6
  %s9 = scalar_select 0, %s8, %s6
  // Predicated region
  $region2: #{mlp_before_cross_attn.1} parent=0 // pred_check
    _
  $region3: #{mlp_before_cross_attn.1} parent=0 // pred_check_branch
    %11 = sbr.rel (0) target = $region5
  $region4: #{mlp_before_cross_attn.1} parent=0 // pred_region
    _
  $region5: #{mlp_before_cross_attn.1} parent=0 // pred_fallthru
    _
  // Predicated region
  $region6: #{mlp_before_cross_attn.1} parent=0 // pred_check
    _
  $region7: #{mlp_before_cross_attn.1} parent=0 // pred_check_branch
    %13 = sbr.rel (0) target = $region9
  $region8: #{mlp_before_cross_attn.1} parent=0 // pred_region
    _
  $region9: #{mlp_before_cross_attn.1} parent=0 // pred_fallthru
    _
  // Predicated region
  $region10: #{mlp_before_cross_attn.1} parent=0 // pred_check
    _
  $region11: #{mlp_before_cross_attn.1} parent=0 // pred_check_branch
    %15 = sbr.rel (0) target = $region13
  $region12: #{mlp_before_cross_attn.1} parent=0 // pred_region
    _
  $region13: #{mlp_before_cross_attn.1} parent=0 // pred_fallthru
    _
  // Predicated region
  $region14: #{mlp_before_cross_attn.1} parent=0 // pred_check
    _
  $region15: #{mlp_before_cross_attn.1} parent=0 // pred_check_branch
    %17 = sbr.rel (0) target = $region17
  $region16: #{mlp_before_cross_attn.1} parent=0 // pred_region
    _
  $region17: #{mlp_before_cross_attn.1} parent=0 // pred_fallthru
    _
  // Predicated region
  $region18: #{mlp_before_cross_attn.1} parent=0 // pred_check
    _
  $region19: #{mlp_before_cross_attn.1} parent=0 // pred_check_branch
    %19 = sbr.rel (0) target = $region21
  $region20: #{mlp_before_cross_attn.1} parent=0 // pred_region
    _
  $region21: #{mlp_before_cross_attn.1} parent=0 // pred_fallthru
    _
  %v20 = vld [vmem:[%s0] sm:$0xff]
  %v21 = vld [vmem:[%s0 + $0x8] sm:$0xff]
  %v22 = vld [vmem:[%s1] sm:$0xff]
  %v23 = vld [vmem:[%s1 + $0x8] sm:$0xff]
  %v24 = vld [vmem:[%s1 + $0x10] sm:$0xff]
  %v25 = vld [vmem:[%s1 + $0x18] sm:$0xff]
  %v26 = vld [vmem:[%s2] sm:$0x7]
  %v27 = vperm.slane %v26, 0
  %vm28 = vcmask 261120
  %v30 = vsel %vm28, %v20, 0
  %v33 = vsel %vm28, %v21, 0
  %35 = vmatpush.msra.mxu0 0.0
  %36 = vmatpush.msra.mxu0 0.0
  %37 = vmatpush.msra.mxu0 0.0
  %38 = vmatpush.msra.mxu0 0.0
  %39 = vmatpush.msra.mxu0 0.0
  %40 = vmatpush.msra.mxu0 0.0
  %41 = vmatpush.msra.mxu0 0.0
  %42 = vmatpush.msra.mxu0 0.0
  %43 = vmatpush.msra.mxu0 0.0
  %44 = vmatpush.msra.mxu0 0.0
  %45 = vmatpush.msra.mxu0 0.0
  %46 = vmatpush.msra.mxu0 0.0
  %47 = vmatpush.msra.mxu0 %v25
  %48 = vmatpush.msra.mxu0 %v24
  %49 = vmatpush.msra.mxu0 %v23
  %50 = vmatpush.msra.mxu0 %v22
  %51 = vmatmul.f32.gmra.mxu0 %v30
  %v52 = vpop.f32.mrf.mxu0
  %v53 = vadd.f32 %v27, %v52
  %54 = vmatmul.f32.gmra.mxu0 %v33
  %v55 = vpop.f32.mrf.mxu0
  %v56 = vadd.f32 %v27, %v55
  %57 = vdwg.mxu0
  %vm58 = vcmask 523264
  %v59 = vsel %vm58, %v53, 0.0
  %60 = vadd.xlane.f32.xlu0 %v59
  %v61 = vpop.xlane.xlu0 %60
  %v62 = vsel %vm58, %v56, 0.0
  %63 = vadd.xlane.f32.xlu0 %v62
  %v64 = vpop.xlane.xlu0 %63
  %v65 = vrcp.pop 64.0
  %v66 = vmul.f32 64.0, %v65
  %v67 = vsub.f32 1.0, %v66
  %v68 = vmul.f32 %v65, %v67
  %v69 = vadd.f32 %v65, %v68
  %vm70 = vweird.f32 %v65
  %v71 = vsel %vm70, %v65, %v69
  %v72 = vmul.f32 %v61, %v71
  %v73 = vmul.f32 %v64, %v71
  %v74 = vsub.f32 %v53, %v72
  %v75 = vsub.f32 %v56, %v73
  %v76 = vmul.f32 %v74, %v74
  %v77 = vmul.f32 %v75, %v75
  %v78 = vsel %vm58, %v76, 0.0
  %79 = vadd.xlane.f32.xlu0 %v78
  %v80 = vpop.xlane.xlu0 %79
  %v81 = vsel %vm58, %v77, 0.0
  %82 = vadd.xlane.f32.xlu0 %v81
  %v83 = vpop.xlane.xlu0 %82
  %v84 = vmul.f32 %v80, %v71
  %v85 = vmul.f32 %v83, %v71
  %v86 = vadd.f32 %v84, 1e-05
  %v87 = vadd.f32 %v85, 1e-05
  %v88 = vrsqrt.pop %v86
  %v89 = vmul.f32 %v88, %v86
  %v90 = vmul.f32 %v89, %v88
  %v91 = vmul.f32 0.5, %v90
  %v92 = vsub.f32 1.5, %v91
  %v93 = vmul.f32 %v88, %v92
  %vm94 = vweird.f32 %v86
  %vm95 = vweird.f32 %v88
  %vm96 = vmor %vm94, %vm95
  %v97 = vsel %vm96, %v88, %v93
  %v98 = vrsqrt.pop %v87
  %v99 = vmul.f32 %v98, %v87
  %v100 = vmul.f32 %v99, %v98
  %v101 = vmul.f32 0.5, %v100
  %v102 = vsub.f32 1.5, %v101
  %v103 = vmul.f32 %v98, %v102
  %vm104 = vweird.f32 %v87
  %vm105 = vweird.f32 %v98
  %vm106 = vmor %vm104, %vm105
  %v107 = vsel %vm106, %v98, %v103
  %v108 = vmul.f32 %v74, %v97
  %v109 = vmul.f32 %v75, %v107
  %v110 = vperm.slane %v26, 1
  %v111 = vmul.f32 %v108, %v110
  %v112 = vmul.f32 %v109, %v110
  %v113 = vperm.slane %v26, 2
  %v114 = vadd.f32 %v111, %v113
  %v115 = vadd.f32 %v112, %v113
  %v116 = vmul.f32 %v114, 0.5
  %v117 = vmul.f32 %v115, 0.5
  %v118 = vmul.f32 %v114, 0.70710677
  %v119 = vmul.f32 %v115, 0.70710677
  %v120 = vmul.f32 %v118, %v118
  %v121 = vmin.f32 16.0, %v120
  %v122 = vmul.f32 %v121, 2.1237322e-06
  %v123 = vadd.f32 %v122, 0.00028619796
  %v124 = vmul.f32 %v121, %v123
  %v125 = vadd.f32 %v124, 0.0036580483
  %v126 = vmul.f32 %v121, %v125
  %v127 = vadd.f32 %v126, 0.05243302
  %v128 = vmul.f32 %v121, %v127
  %v129 = vadd.f32 %v128, 0.18741608
  %v130 = vmul.f32 %v121, %v129
  %v131 = vadd.f32 %v130, 1.1283791
  %v132 = vmul.f32 %v118, %v131
  %v133 = vmul.f32 %v121, 3.8918573e-05
  %v134 = vadd.f32 %v133, 0.001143296
  %v135 = vmul.f32 %v121, %v134
  %v136 = vadd.f32 %v135, 0.014752088
  %v137 = vmul.f32 %v121, %v136
  %v138 = vadd.f32 %v137, 0.112945676
  %v139 = vmul.f32 %v121, %v138
  %v140 = vadd.f32 %v139, 0.4994258
  %v141 = vmul.f32 %v121, %v140
  %v142 = vadd.f32 %v141, 1.0
  %v143 = vrcp.pop %v142
  %v144 = vmul.f32 %v142, %v143
  %v145 = vsub.f32 1.0, %v144
  %v146 = vmul.f32 %v143, %v145
  %v147 = vadd.f32 %v143, %v146
  %vm148 = vweird.f32 %v142
  %vm149 = vweird.f32 %v143
  %vm150 = vmor %vm148, %vm149
  %v151 = vsel %vm150, %v143, %v147
  %v152 = vand.u32 2147483647, %v142
  %vm153 = vcmp.eq.f32.partialorder %v152, 8.507059e+37
  %v154 = vand.u32 %v142, 2147483648
  %v155 = vor.u32 1.1754944e-38, %v154
  %v156 = vsel %vm153, %v155, %v151
  %v157 = vmul.f32 %v132, %v156
  %v158 = vmin.f32 %v157, 1.0
  %v159 = vmax.f32 %v158, -1.0
  %v160 = vmul.f32 %v119, %v119
  %v161 = vmin.f32 16.0, %v160
  %v162 = vmul.f32 %v161, 2.1237322e-06
  %v163 = vadd.f32 %v162, 0.00028619796
  %v164 = vmul.f32 %v161, %v163
  %v165 = vadd.f32 %v164, 0.0036580483
  %v166 = vmul.f32 %v161, %v165
  %v167 = vadd.f32 %v166, 0.05243302
  %v168 = vmul.f32 %v161, %v167
  %v169 = vadd.f32 %v168, 0.18741608
  %v170 = vmul.f32 %v161, %v169
  %v171 = vadd.f32 %v170, 1.1283791
  %v172 = vmul.f32 %v119, %v171
  %v173 = vmul.f32 %v161, 3.8918573e-05
  %v174 = vadd.f32 %v173, 0.001143296
  %v175 = vmul.f32 %v161, %v174
  %v176 = vadd.f32 %v175, 0.014752088
  %v177 = vmul.f32 %v161, %v176
  %v178 = vadd.f32 %v177, 0.112945676
  %v179 = vmul.f32 %v161, %v178
  %v180 = vadd.f32 %v179, 0.4994258
  %v181 = vmul.f32 %v161, %v180
  %v182 = vadd.f32 %v181, 1.0
  %v183 = vrcp.pop %v182
  %v184 = vmul.f32 %v182, %v183
  %v185 = vsub.f32 1.0, %v184
  %v186 = vmul.f32 %v183, %v185
  %v187 = vadd.f32 %v183, %v186
  %vm188 = vweird.f32 %v182
  %vm189 = vweird.f32 %v183
  %vm190 = vmor %vm188, %vm189
  %v191 = vsel %vm190, %v183, %v187
  %v192 = vand.u32 2147483647, %v182
  %vm193 = vcmp.eq.f32.partialorder %v192, 8.507059e+37
  %v194 = vand.u32 %v182, 2147483648
  %v195 = vor.u32 1.1754944e-38, %v194
  %v196 = vsel %vm193, %v195, %v191
  %v197 = vmul.f32 %v172, %v196
  %v198 = vmin.f32 %v197, 1.0
  %v199 = vmax.f32 %v198, -1.0
  %v200 = vadd.f32 %v159, 1.0
  %v201 = vadd.f32 %v199, 1.0
  %v202 = vmul.f32 %v116, %v200
  %v203 = vmul.f32 %v117, %v201
  %v204 = vld [vmem:[%s3] sm:$0xff]
  %v205 = vld [vmem:[%s3 + $0x8] sm:$0xff]
  %v206 = vld [vmem:[%s3 + $0x10] sm:$0xff]
  %v207 = vld [vmem:[%s3 + $0x18] sm:$0xff]
  %v208 = vld [vmem:[%s3 + $0x20] sm:$0xff]
  %v209 = vld [vmem:[%s3 + $0x28] sm:$0xff]
  %v210 = vld [vmem:[%s3 + $0x30] sm:$0xff]
  %v211 = vld [vmem:[%s3 + $0x38] sm:$0xff]
  %v212 = vld [vmem:[%s4] sm:$0x1]
  %v214 = vperm.slane %v212, 0
  %v217 = vsel %vm58, %v202, 0
  %v220 = vsel %vm58, %v203, 0
  %222 = vmatpush.msra.mxu0 0.0
  %223 = vmatpush.msra.mxu0 0.0
  %224 = vmatpush.msra.mxu0 0.0
  %225 = vmatpush.msra.mxu0 0.0
  %226 = vmatpush.msra.mxu0 0.0
  %227 = vmatpush.msra.mxu0 0.0
  %228 = vmatpush.msra.mxu0 0.0
  %229 = vmatpush.msra.mxu0 0.0
  %230 = vmatpush.msra.mxu0 %v211
  %231 = vmatpush.msra.mxu0 %v210
  %232 = vmatpush.msra.mxu0 %v209
  %233 = vmatpush.msra.mxu0 %v208
  %234 = vmatpush.msra.mxu0 %v207
  %235 = vmatpush.msra.mxu0 %v206
  %236 = vmatpush.msra.mxu0 %v205
  %237 = vmatpush.msra.mxu0 %v204
  %238 = vmatmul.f32.gmra.mxu0 %v217
  %v239 = vpop.f32.mrf.mxu0
  %v240 = vadd.f32 %v214, %v239
  %241 = vmatmul.f32.gmra.mxu0 %v220
  %v242 = vpop.f32.mrf.mxu0
  %v243 = vadd.f32 %v214, %v242
  %244 = vdwg.mxu0
  %245 = vst [vmem:[%s5] sm:$0xff] %v240
  %246 = vst [vmem:[%s5 + $0x8] sm:$0xff] %v243
  // Predicated region
  $region22: #{mlp_before_cross_attn.1} parent=0 // pred_check
    _
  $region23: #{mlp_before_cross_attn.1} parent=0 // pred_check_branch
    %248 = sbr.rel (0) target = $region25
  $region24: #{mlp_before_cross_attn.1} parent=0 // pred_region
    _
  $region25: #{mlp_before_cross_attn.1} parent=0 // pred_fallthru
    _
  // Predicated region
  $region26: #{mlp_before_cross_attn.1} parent=0 // pred_check
    _
  $region27: #{mlp_before_cross_attn.1} parent=0 // pred_check_branch
    %250 = sbr.rel (0) target = $region29
  $region28: #{mlp_before_cross_attn.1} parent=0 // pred_region
    _
  $region29: #{mlp_before_cross_attn.1} parent=0 // pred_fallthru
    _

</llo_original>
